<compile_context>
chip_gen: v7x
topology: tpu7x:2x2x1
jax: 0.10.0
libtpu: 0.0.40
codegen_flags: <defaults>
</compile_context>

<pallas_src>
import jax
import jax.numpy as jnp
from jax.experimental import pallas as pl
from jax.experimental.pallas import tpu as pltpu

BN_EPS = 1e-5
LANES = 128
STATS_ROWS = 8  # sublane-aligned stats block; row 0 = sum, row 1 = sum of squares


def _round_up(x, m):
    return (x + m - 1) // m * m


def _stats_kernel(p_ref, w_ref, stats_ref):
    # Conv-as-matmul on the MXU: bf16 operands, f32 accumulation.
    y = jnp.dot(p_ref[...], w_ref[...], preferred_element_type=jnp.float32)
    c = y.shape[1]
    s = jnp.sum(y, axis=0, keepdims=True)        # (1, Cpad)  per-channel sum
    ss = jnp.sum(y * y, axis=0, keepdims=True)   # (1, Cpad)  per-channel sum of squares
    pad = jnp.zeros((STATS_ROWS - 2, c), jnp.float32)
    stats_ref[...] = jnp.concatenate([s, ss, pad], axis=0)[None]


def _apply_kernel(p_ref, w_ref, scale_ref, shift_ref, o_ref):
    # Recompute the matmul (cheaper HBM-wise than storing/reloading y), then fused
    # BN affine + ReLU.  Post-matmul math in f32 (no bf16 VPU on v5e).
    y = jnp.dot(p_ref[...], w_ref[...], preferred_element_type=jnp.float32)
    o_ref[...] = jnp.maximum(y * scale_ref[...] + shift_ref[...], 0.0).astype(o_ref.dtype)


def mininetv2_downsample(x_nchw, conv_w, conv_b, bn_gamma, bn_beta, *, block_m=1024):
    """x_nchw: (N, Cin, H, W); conv_w: (Cout, Cin, 3, 3) (PyTorch layout)."""
    del conv_b  # exactly cancelled by train-mode BN mean subtraction
    N, Cin, H, W = x_nchw.shape
    Cout = conv_w.shape[0]
    Ho = (H + 2 * 1 - 3) // 2 + 1
    Wo = (W + 2 * 1 - 3) // 2 + 1
    M = N * Ho * Wo
    K = 9 * Cin
    c_pad = _round_up(Cout, LANES)

    # --- wrapper glue: NCHW -> NHWC (bf16), pad, im2col patch extraction (stride 2) ---
    x = jnp.transpose(x_nchw, (0, 2, 3, 1)).astype(jnp.bfloat16)
    x_pad = jnp.pad(x, ((0, 0), (1, 1), (1, 1), (0, 0)))
    taps = []
    for kh in range(3):
        for kw in range(3):
            taps.append(x_pad[:, kh:kh + 2 * Ho - 1:2, kw:kw + 2 * Wo - 1:2, :])
    patches = jnp.concatenate(taps, axis=-1).reshape(M, K)  # (M, 9*Cin), bf16

    # Tile M; zero-pad rows up to a tile multiple (zero rows add 0 to sum/sumsq,
    # so the batch statistics stay exact when dividing by the true M).
    tm = _round_up(min(block_m, M), 16)
    m_pad = _round_up(M, tm)
    if m_pad != M:
        patches = jnp.pad(patches, ((0, m_pad - M), (0, 0)))
    n_tiles = m_pad // tm

    # Weight (Cout, Cin, 3, 3) -> (kh, kw, Cin, Cout) -> (K, Cout), pad Cout to 128 lanes.
    w_mat = jnp.transpose(conv_w, (2, 3, 1, 0)).reshape(K, Cout)
    w_mat = jnp.pad(w_mat, ((0, 0), (0, c_pad - Cout))).astype(jnp.bfloat16)
    gamma = jnp.pad(bn_gamma.astype(jnp.float32), (0, c_pad - Cout))
    beta = jnp.pad(bn_beta.astype(jnp.float32), (0, c_pad - Cout))

    bytes_p = int(patches.size) * 2
    bytes_w = int(w_mat.size) * 2
    flops = 2 * m_pad * K * c_pad + 3 * m_pad * c_pad
    cparams = pltpu.CompilerParams(
        dimension_semantics=("parallel",),          # M tiles shard across v7x's 2 TCs
        vmem_limit_bytes=32 * 1024 * 1024)

    # ---- pass 1: per-tile matmul + partial per-channel sum / sumsq ----
    stats = pl.pallas_call(
        _stats_kernel,
        out_shape=jax.ShapeDtypeStruct((n_tiles, STATS_ROWS, c_pad), jnp.float32),
        grid=(n_tiles,),
        in_specs=[
            pl.BlockSpec((tm, K), lambda i: (i, 0)),
            pl.BlockSpec((K, c_pad), lambda i: (0, 0)),
        ],
        out_specs=pl.BlockSpec((1, STATS_ROWS, c_pad), lambda i: (i, 0, 0)),
        compiler_params=cparams,
        cost_estimate=pl.CostEstimate(
            flops=flops, transcendentals=0,
            bytes_accessed=bytes_p + bytes_w + n_tiles * STATS_ROWS * c_pad * 4),
    )(patches, w_mat)

    # ---- tiny per-channel finalization (a few hundred floats) in plain JAX ----
    # NOTE: f32 accumulators; E[x^2]-E[x]^2 is fine at these magnitudes.
    sums = jnp.sum(stats[:, 0, :], axis=0)
    sumsq = jnp.sum(stats[:, 1, :], axis=0)
    mean = sums / M
    var = jnp.maximum(sumsq / M - mean * mean, 0.0)
    inv_std = jax.lax.rsqrt(var + BN_EPS)
    scale = (gamma * inv_std).reshape(1, c_pad)
    shift = (beta - mean * gamma * inv_std).reshape(1, c_pad)

    # ---- pass 2: recompute matmul, fused scale/shift + ReLU, lane-dense output ----
    out_flat = pl.pallas_call(
        _apply_kernel,
        out_shape=jax.ShapeDtypeStruct((m_pad, c_pad), jnp.float32),
        grid=(n_tiles,),
        in_specs=[
            pl.BlockSpec((tm, K), lambda i: (i, 0)),
            pl.BlockSpec((K, c_pad), lambda i: (0, 0)),
            pl.BlockSpec((1, c_pad), lambda i: (0, 0)),
            pl.BlockSpec((1, c_pad), lambda i: (0, 0)),
        ],
        out_specs=pl.BlockSpec((tm, c_pad), lambda i: (i, 0)),
        compiler_params=cparams,
        cost_estimate=pl.CostEstimate(
            flops=flops, transcendentals=0,
            bytes_accessed=bytes_p + bytes_w + 2 * c_pad * 4 + m_pad * c_pad * 4),
    )(patches, w_mat, scale, shift)

    # (M_pad, Cpad) -> (N, Ho, Wo, Cout) -> NCHW
    out = out_flat[:M, :Cout].reshape(N, Ho, Wo, Cout)
    return jnp.transpose(out, (0, 3, 1, 2))


def _reference(x_nchw, conv_w, conv_b, bn_gamma, bn_beta):
    """Pure-JAX f32 reference of the same forward pass (sanity check)."""
    x = jnp.transpose(x_nchw, (0, 2, 3, 1)).astype(jnp.float32)
    w_hwio = jnp.transpose(conv_w, (2, 3, 1, 0)).astype(jnp.float32)
    y = jax.lax.conv_general_dilated(
        x, w_hwio, window_strides=(2, 2), padding=[(1, 1), (1, 1)],
        dimension_numbers=("NHWC", "HWIO", "NHWC"))
    y = y + conv_b.reshape(1, 1, 1, -1)
    mean = jnp.mean(y, axis=(0, 1, 2), keepdims=True)
    var = jnp.mean((y - mean) ** 2, axis=(0, 1, 2), keepdims=True)
    y = (y - mean) * jax.lax.rsqrt(var + BN_EPS)
    y = y * bn_gamma.reshape(1, 1, 1, -1) + bn_beta.reshape(1, 1, 1, -1)
    y = jnp.maximum(y, 0.0)
    return jnp.transpose(y, (0, 3, 1, 2))


if __name__ == "__main__":
    key = jax.random.PRNGKey(0)
    k_x, k_w, k_b, k_g, k_be = jax.random.split(key, 5)

    N, Cin, H, W = 2, 4, 16, 16
    Cout = 8

    x = jax.random.normal(k_x, (N, Cin, H, W), dtype=jnp.float32)
    conv_w = 0.1 * jax.random.normal(k_w, (Cout, Cin, 3, 3), dtype=jnp.float32)
    conv_b = 0.1 * jax.random.normal(k_b, (Cout,), dtype=jnp.float32)
    bn_gamma = 1.0 + 0.1 * jax.random.normal(k_g, (Cout,), dtype=jnp.float32)
    bn_beta = 0.1 * jax.random.normal(k_be, (Cout,), dtype=jnp.float32)

    # block_m=64 -> M=128 splits into 2 row tiles, exercising the multi-tile grid
    # and the cross-tile BatchNorm reduction.
    out = mininetv2_downsample(x, conv_w, conv_b, bn_gamma, bn_beta, block_m=64)
    out = jax.block_until_ready(out)

    ref = _reference(x, conv_w, conv_b, bn_gamma, bn_beta)
    assert out.shape == (N, Cout, H // 2, W // 2), out.shape
    # bf16 matmul operands (f32 accumulation) vs. full-f32 reference -> loose tol.
    err = float(jnp.max(jnp.abs(out - ref)))
    assert err < 5e-2, err

    print("KERNEL_OK")
</pallas_src>

<mosaic_0001>
module attributes {stable_mosaic.version = 11 : i64} {
  func.func @_stats_kernel(%arg0: i32, %arg1: memref<64x36xbf16, #tpu.memory_space<vmem>>, %arg2: memref<36x128xbf16, #tpu.memory_space<vmem>>, %arg3: memref<1x8x128xf32, #tpu.memory_space<vmem>>) attributes {dimension_semantics = [#tpu.dimension_semantics<parallel>], iteration_bounds = array<i64: 2>, scalar_prefetch = 0 : i64, scratch_operands = 0 : i64, tpu.core_type = #tpu.core_type<tc>, window_params = [{transform_indices = @transform_0, window_bounds = array<i64: 64, 36>}, {pipeline_mode = #tpu.pipeline_mode<synchronous>, transform_indices = @transform_1, window_bounds = array<i64: 36, 128>}, {transform_indices = @transform_2, window_bounds = array<i64: 1, 8, 128>}]} {
    %c0 = arith.constant 0 : index
    %c0_0 = arith.constant 0 : index
    %0 = vector.load %arg1[%c0, %c0_0] : memref<64x36xbf16, #tpu.memory_space<vmem>>, vector<64x36xbf16>
    %c0_1 = arith.constant 0 : index
    %c0_2 = arith.constant 0 : index
    %1 = vector.load %arg2[%c0_1, %c0_2] : memref<36x128xbf16, #tpu.memory_space<vmem>>, vector<36x128xbf16>
    %cst = arith.constant dense<0.000000e+00> : vector<64x128xf32>
    %2 = tpu.matmul %0, %1, %cst {dimension_numbers = #tpu.dot_dimension_numbers<[1], [0], [0], [1], [0, 0, 1, 1], [], []>} : vector<64x36xbf16>, vector<36x128xbf16>, vector<64x128xf32> -> vector<64x128xf32>
    %cst_3 = arith.constant dense<0.000000e+00> : vector<128xf32>
    %3 = vector.multi_reduction <add>, %2, %cst_3 [0] : vector<64x128xf32> to vector<128xf32>
    %4 = vector.shape_cast %3 : vector<128xf32> to vector<1x128xf32>
    %5 = arith.mulf %2, %2 : vector<64x128xf32>
    %cst_4 = arith.constant dense<0.000000e+00> : vector<128xf32>
    %6 = vector.multi_reduction <add>, %5, %cst_4 [0] : vector<64x128xf32> to vector<128xf32>
    %7 = vector.shape_cast %6 : vector<128xf32> to vector<1x128xf32>
    %cst_5 = arith.constant 0.000000e+00 : f32
    %8 = vector.broadcast %cst_5 : f32 to vector<6x128xf32>
    %9 = tpu.concatenate %4, %7, %8 in 0 : vector<1x128xf32>, vector<1x128xf32>, vector<6x128xf32> -> vector<8x128xf32>
    %10 = vector.shape_cast %9 : vector<8x128xf32> to vector<1x8x128xf32>
    %c0_6 = arith.constant 0 : index
    %c0_7 = arith.constant 0 : index
    %c0_8 = arith.constant 0 : index
    %11 = vector.load %arg3[%c0_6, %c0_7, %c0_8] : memref<1x8x128xf32, #tpu.memory_space<vmem>>, vector<1x8x128xf32>
    tpu.vector_store %arg3[%c0_6, %c0_7, %c0_8], %10 {strides = array<i32>} : memref<1x8x128xf32, #tpu.memory_space<vmem>>, vector<1x8x128xf32>,
    return
  }
  func.func @transform_0(%arg0: i32) -> (i32, i32) {
    %c0_i32 = arith.constant 0 : i32
    %c0_i32_0 = arith.constant 0 : i32
    return %arg0, %c0_i32 : i32, i32
  }
  func.func @transform_1(%arg0: i32) -> (i32, i32) {
    %c0_i32 = arith.constant 0 : i32
    %c0_i32_0 = arith.constant 0 : i32
    %c0_i32_1 = arith.constant 0 : i32
    return %c0_i32, %c0_i32_0 : i32, i32
  }
  func.func @transform_2(%arg0: i32) -> (i32, i32, i32) {
    %c0_i32 = arith.constant 0 : i32
    %c0_i32_0 = arith.constant 0 : i32
    %c0_i32_1 = arith.constant 0 : i32
    return %arg0, %c0_i32, %c0_i32_0 : i32, i32, i32
  }
}

</mosaic_0001>

<llo_original>
// kernel: tpu_custom_call.1
$region0: #{tpu_custom_call.1}
  #allocation0 [shape = 'u32[]', space=smem, size = 0x4, offset = 0x4, fixed_abs, tag = 'smem constant byte address 0x4 - core index']
  #allocation1 [shape = 'u32[144,128]{1,0:T(1,128)}', space=vmem, size = 0x12000, scoped, tag = 'internal scratch']
  %s0 = inlined_call_operand.vmem [shape: bf16[128,36], index: 0, kind: input, shape index: {}]
  %s1 = inlined_call_operand.vmem [shape: bf16[36,128], index: 1, kind: input, shape index: {}]
  %s2 = inlined_call_operand.hbm [shape: f32[2,8,128], index: 2, kind: output, shape index: {}]
  %s3 = sld [smem:[#allocation0]]
  $region41: #{tpu_custom_call.1} parent=0
    _
  %s5 = ssub.s32 1, %s3
  %s6 = scalar_select 0, %s5, %s3
  $region1: #{tpu_custom_call.1} parent=0
    #allocation2 [shape = 'u8[8192]{0}', space=vmem, size = 0x2000, scoped, tag = 'output window, operand 0']
    #allocation3 [shape = 's32[2]{0}', space=sflag, size = 0x8, scoped, tag = 'scoped memory for tpu_custom_call.1']
    %7 = vsyncpa [#allocation3], 0
    %s8 = scalar_lea.sflag [#allocation3], 1
    %9 = vsyncpa %s8, 0
    loop: start=0, step=1, limit=4
    $region2: #{tpu_custom_call.1} parent=1 // loop_pre_header
      _
    $region3: #{tpu_custom_call.1} parent=1 // loop_header
      %s11 = sphi 0, %s15
      %p12 = scmp.ge.s32.totalorder %s11, 4
      %s21 = sphi 0, %s23
      %s24 = sphi 0, %s21
      %s25 = sphi 0, %s24
      %s41 = sphi 0, %s25
      %s45 = sphi 0, %s45
      %s47 = sphi 0, %s45
      %s48 = sphi 0, %s47
      %s62 = sphi 0, %s48
      %s68 = sphi 0, %s70
      %s71 = sphi 0, %s68
      %s72 = sphi 0, %s71
      %s88 = sphi 0, %s72
    $region4: #{tpu_custom_call.1} parent=1 // loop_header_branch
      %14 = sbr.rel (%p12) target = $region8
    $region5: #{tpu_custom_call.1} parent=1 // loop_body
      %s16 = ssub.s32 %s11, 1
      %s17 = ssub.s32 %s11, 2
      %s18 = sadd.s32 %s11, 1
      %s19 = ssub.s32 %s11, %s18
      %p20 = scmp.eq.s32.totalorder %s19, 0
      %s22 = sadd.s32 %s21, 1
      %s23 = scalar_select %p20, %s21, %s22
      %p26 = pneg %p20
      %p27 = scmp.eq.s32.totalorder %s11, 1
      %p28 = por %p26, %p27
      %p29 = scmp.ne.s32.totalorder %s21, %s24
      %p30 = scmp.eq.s32.totalorder %s11, 0
      %p31 = por %p29, %p30
      %p32 = scmp.ne.s32.totalorder %s21, %s24
      %p33 = scmp.eq.s32.totalorder %s16, 1
      %p34 = por %p32, %p33
      %p35 = scmp.ne.s32.totalorder %s24, %s25
      %p36 = scmp.eq.s32.totalorder %s16, 0
      %p37 = por %p35, %p36
      %p38 = scmp.ne.s32.totalorder %s24, %s25
      %p39 = scmp.eq.s32.totalorder %s17, 1
      %p40 = por %p38, %p39
      %p42 = scmp.ne.s32.totalorder %s25, %s41
      %p43 = scmp.eq.s32.totalorder %s17, 0
      %p44 = por %p42, %p43
      %s46 = sadd.s32 %s45, 1
      %p49 = scmp.eq.s32.totalorder %s11, 1
      %p50 = scmp.ne.s32.totalorder %s45, %s47
      %p51 = scmp.eq.s32.totalorder %s11, 0
      %p52 = por %p50, %p51
      %p53 = scmp.ne.s32.totalorder %s45, %s47
      %p54 = scmp.eq.s32.totalorder %s16, 1
      %p55 = por %p53, %p54
      %p56 = scmp.ne.s32.totalorder %s47, %s48
      %p57 = scmp.eq.s32.totalorder %s16, 0
      %p58 = por %p56, %p57
      %p59 = scmp.ne.s32.totalorder %s47, %s48
      %p60 = scmp.eq.s32.totalorder %s17, 1
      %p61 = por %p59, %p60
      %p63 = scmp.ne.s32.totalorder %s48, %s62
      %p64 = scmp.eq.s32.totalorder %s17, 0
      %p65 = por %p63, %p64
      %s66 = ssub.s32 %s11, %s18
      %p67 = scmp.eq.s32.totalorder %s66, 0
      %s69 = sadd.s32 %s68, 1
      %s70 = scalar_select %p67, %s68, %s69
      %p73 = pneg %p67
      %p74 = scmp.eq.s32.totalorder %s11, 1
      %p75 = por %p73, %p74
      %p76 = scmp.ne.s32.totalorder %s68, %s71
      %p77 = scmp.eq.s32.totalorder %s11, 0
      %p78 = por %p76, %p77
      %p79 = scmp.ne.s32.totalorder %s68, %s71
      %p80 = scmp.eq.s32.totalorder %s16, 1
      %p81 = por %p79, %p80
      %p82 = scmp.ne.s32.totalorder %s71, %s72
      %p83 = scmp.eq.s32.totalorder %s16, 0
      %p84 = por %p82, %p83
      %p85 = scmp.ne.s32.totalorder %s71, %s72
      %p86 = scmp.eq.s32.totalorder %s17, 1
      %p87 = por %p85, %p86
      %p89 = scmp.ne.s32.totalorder %s72, %s88
      %p90 = scmp.eq.s32.totalorder %s17, 0
      %p91 = por %p89, %p90
      %p92 = scmp.le.s32.totalorder 1, %s11
      %p93 = scmp.lt.s32.totalorder %s11, 3
      %p94 = pnand %p92, %p93
      %p95 = pneg %p94
      // Predicated region
      $region9: #{tpu_custom_call.1} parent=5 // pred_check
        _
      $region10: #{tpu_custom_call.1} parent=5 // pred_check_branch
        %97 = sbr.rel (%p94) target = $region12
      $region11: #{tpu_custom_call.1} parent=5 // pred_region
        %s98 = ssub.s32 %s11, 1
        // Predicated region
        $region13: #{tpu_custom_call.1} parent=11 // pred_check
          %p99 = pneg %p58
        $region14: #{tpu_custom_call.1} parent=11 // pred_check_branch
          %101 = sbr.rel (%p99) target = $region16
        $region15: #{tpu_custom_call.1} parent=11 // pred_region
          _
        $region16: #{tpu_custom_call.1} parent=11 // pred_fallthru
          _
      $region12: #{tpu_custom_call.1} parent=5 // pred_fallthru
        _
      %p102 = scmp.lt.s32.totalorder %s11, 2
      // Predicated region
      $region17: #{tpu_custom_call.1} parent=5 // pred_check
        %p103 = pneg %p102
      $region18: #{tpu_custom_call.1} parent=5 // pred_check_branch
        %105 = sbr.rel (%p103) target = $region20
      $region19: #{tpu_custom_call.1} parent=5 // pred_region
        // Predicated region
        $region21: #{tpu_custom_call.1} parent=19 // pred_check
          %p106 = pneg %p31
        $region22: #{tpu_custom_call.1} parent=19 // pred_check_branch
          %108 = sbr.rel (%p106) target = $region24
        $region23: #{tpu_custom_call.1} parent=19 // pred_region
          %s109 = smul.u32 8, %s11
          %p110 = scmp.lt.s32.totalorder %s109, 15
          %s111 = scalar_select %p110, %s109, 15
          %s112 = smul.addr %s111, 4
          %s113 = scalar_lea.vmem %s0, %s112
          %s114 = smul.u32 8, %s11
        $region24: #{tpu_custom_call.1} parent=19 // pred_fallthru
          _
      $region20: #{tpu_custom_call.1} parent=5 // pred_fallthru
        _
      %p115 = scmp.le.s32.totalorder 1, %s11
      %p116 = scmp.lt.s32.totalorder %s11, 3
      %p117 = pnand %p115, %p116
      %p118 = pneg %p117
      // Predicated region
      $region25: #{tpu_custom_call.1} parent=5 // pred_check
        _
      $region26: #{tpu_custom_call.1} parent=5 // pred_check_branch
        %120 = sbr.rel (%p117) target = $region28
      $region27: #{tpu_custom_call.1} parent=5 // pred_region
        %s121 = ssub.s32 %s11, 1
        %s122 = smul.u32 8, %s16
        %p123 = scmp.lt.s32.totalorder %s122, 15
        %s124 = scalar_select %p123, %s122, 15
        %s125 = smul.addr %s124, 4
        %s126 = scalar_lea.vmem %s0, %s125
        %p127 = pneg %p37
        %p128 = pneg %p34
        %p129 = pneg %p58
        %p130 = pneg %p55
        %p131 = pneg %p84
        %p132 = pneg %p81
        %s133 = sand.u32 %s71, 1
        %s134 = scalar_lea.sflag [#allocation3], %s133
        %s135 = sand.u32 %s71, 1
        %s136 = smul.addr %s135, 8
        %s137 = scalar_lea.vmem [#allocation2], %s136
        %s138 = smul.u32 8, %s16
        %p139 = scmp.lt.s32.totalorder %s138, 15
        %s140 = scalar_select %p139, %s138, 15
        %s141 = smul.addr %s140, 4
        %s142 = scalar_lea.vmem %s0, %s141
        %s143 = smul.u32 8, %s16
        %v145 = vld [vmem:[%s142] sm:$0xf]
        %v146 = vld [vmem:[%s142 + $0x4] sm:$0xf]
        %v147 = vld [vmem:[%s142 + $0x8] sm:$0xf]
        %v148 = vld [vmem:[%s142 + $0xc] sm:$0xf]
        %v149 = vld [vmem:[%s142 + $0x10] sm:$0xf]
        %v150 = vld [vmem:[%s142 + $0x14] sm:$0xf]
        %v151 = vld [vmem:[%s142 + $0x18] sm:$0xf]
        %v152 = vld [vmem:[%s142 + $0x1c] sm:$0xf]
        %v153 = vld [vmem:[%s1] sm:$0xf]
        %v154 = vld [vmem:[%s1 + $0x4] sm:$0xf]
        %v155 = vld [vmem:[%s1 + $0x8] sm:$0xf]
        %v156 = vld [vmem:[%s1 + $0xc] sm:$0xf]
        %v157 = vld [vmem:[%s1 + $0x10] sm:$0x3]
        %v166 = vunpack.c.l.b16 %v145
        %v167 = vunpack.c.l.b16 %v146
        %v168 = vunpack.c.l.b16 %v147
        %v169 = vunpack.c.l.b16 %v148
        %v170 = vunpack.c.l.b16 %v149
        %v171 = vunpack.c.l.b16 %v150
        %v172 = vunpack.c.l.b16 %v151
        %v173 = vunpack.c.l.b16 %v152
        %v174 = vpack.c.b16 %v167, %v166
        %v175 = vpack.c.b16 %v169, %v168
        %v176 = vpack.c.b16 %v171, %v170
        %v177 = vpack.c.b16 %v173, %v172
        %v183 = vunpack.c.l.b16 %v153
        %v184 = vunpack.c.l.b16 %v154
        %v185 = vunpack.c.l.b16 %v155
        %v186 = vunpack.c.l.b16 %v156
        %v187 = vunpack.c.l.b16 %v157
        %v188 = vpack.c.b16 %v184, %v183
        %v189 = vpack.c.b16 %v186, %v185
        %v190 = vpack.c.b16 %v187, %v187
        %vm193 = vcmask 293888
        %v195 = vsel %vm193, %v174, 0
        %v198 = vsel %vm193, %v175, 0
        %v201 = vsel %vm193, %v176, 0
        %v204 = vsel %vm193, %v177, 0
        %vm206 = vcmask 1041408
        %v208 = vsel %vm206, %v190, 0
        %210 = vmatprep.subr.bf16.mxu0 0
        %211 = vmatpush1.bf16.msra.mxu0 %v188
        %212 = vmatprep.subr.bf16.mxu0 0
        %213 = vmatpush1.bf16.msra.mxu0 %v189
        %214 = vmatprep.subr.bf16.mxu0 0
        %215 = vmatpush1.bf16.msra.mxu0 %v208
        %216 = vmatprep.subr.bf16.mxu0 0
        %217 = vmatpush1.bf16.msra.mxu0 0
        %218 = vmatprep.subr.bf16.mxu0 0
        %219 = vmatpush1.bf16.msra.mxu0 0
        %220 = vmatprep.subr.bf16.mxu0 0
        %221 = vmatpush1.bf16.msra.mxu0 0
        %222 = vmatprep.subr.bf16.mxu0 0
        %223 = vmatpush1.bf16.msra.mxu0 0
        %224 = vmatprep.subr.bf16.mxu0 0
        %225 = vmatpush1.bf16.msra.mxu0 0
        %226 = vmatprep.subr.bf16.mxu0 0
        %227 = vmatpush1.bf16.msra.mxu0 0
        %228 = vmatprep.subr.bf16.mxu0 0
        %229 = vmatpush1.bf16.msra.mxu0 0
        %230 = vmatprep.subr.bf16.mxu0 0
        %231 = vmatpush1.bf16.msra.mxu0 0
        %232 = vmatprep.subr.bf16.mxu0 0
        %233 = vmatpush1.bf16.msra.mxu0 0
        %234 = vmatprep.subr.bf16.mxu0 0
        %235 = vmatpush1.bf16.msra.mxu0 0
        %236 = vmatprep.subr.bf16.mxu0 0
        %237 = vmatpush1.bf16.msra.mxu0 0
        %238 = vmatprep.subr.bf16.mxu0 0
        %239 = vmatpush1.bf16.msra.mxu0 0
        %240 = vmatprep.subr.bf16.mxu0 0
        %241 = vmatpush1.bf16.msra.mxu0 0
        %242 = vmatprep.mubr.bf16.mxu0 0
        %243 = vmatmul.mubr.bf16.gmra.mrb[0].mxu0 %v195
        %v244 = vpop.f32.mrb[0].mxu0
        %v245 = vadd.f32 0.0, %v244
        %v246 = vpop.f32.mrb[0].mxu0
        %v247 = vpop.f32.mrb[0].mxu0
        %v248 = vadd.f32 0.0, %v247
        %v249 = vpop.f32.mrb[0].mxu0
        %250 = vmatprep.mubr.bf16.mxu0 0
        %251 = vmatmul.mubr.bf16.gmra.mrb[0].mxu0 %v198
        %v252 = vpop.f32.mrb[0].mxu0
        %v253 = vadd.f32 0.0, %v252
        %v254 = vpop.f32.mrb[0].mxu0
        %v255 = vpop.f32.mrb[0].mxu0
        %v256 = vadd.f32 0.0, %v255
        %v257 = vpop.f32.mrb[0].mxu0
        %258 = vmatprep.mubr.bf16.mxu0 0
        %259 = vmatmul.mubr.bf16.gmra.mrb[0].mxu0 %v201
        %v260 = vpop.f32.mrb[0].mxu0
        %v261 = vadd.f32 0.0, %v260
        %v262 = vpop.f32.mrb[0].mxu0
        %v263 = vpop.f32.mrb[0].mxu0
        %v264 = vadd.f32 0.0, %v263
        %v265 = vpop.f32.mrb[0].mxu0
        %266 = vmatprep.mubr.bf16.mxu0 0
        %267 = vmatmul.mubr.bf16.gmra.mrb[0].mxu0 %v204
        %v268 = vpop.f32.mrb[0].mxu0
        %v269 = vadd.f32 0.0, %v268
        %v270 = vpop.f32.mrb[0].mxu0
        %v271 = vpop.f32.mrb[0].mxu0
        %v272 = vadd.f32 0.0, %v271
        %v273 = vpop.f32.mrb[0].mxu0
        %274 = vdwg.mxu0
        %v275 = vadd.f32 %v245, %v248
        %v276 = vadd.f32 %v275, %v253
        %v277 = vadd.f32 %v276, %v256
        %v278 = vadd.f32 %v277, %v261
        %v279 = vadd.f32 %v278, %v264
        %v280 = vadd.f32 %v279, %v269
        %v281 = vadd.f32 %v280, %v272
        %v282 = vrot.slane %v281, 4
        %v283 = vadd.f32 %v281, %v282
        %v284 = vrot.slane %v283, 2
        %v285 = vadd.f32 %v283, %v284
        %v286 = vrot.slane %v285, 1
        %v287 = vadd.f32 %v285, %v286
        %v288 = vmul.f32 %v245, %v245
        %v289 = vmul.f32 %v248, %v248
        %v290 = vmul.f32 %v253, %v253
        %v291 = vmul.f32 %v256, %v256
        %v292 = vmul.f32 %v261, %v261
        %v293 = vmul.f32 %v264, %v264
        %v294 = vmul.f32 %v269, %v269
        %v295 = vmul.f32 %v272, %v272
        %v296 = vadd.f32 %v288, %v289
        %v297 = vadd.f32 %v296, %v290
        %v298 = vadd.f32 %v297, %v291
        %v299 = vadd.f32 %v298, %v292
        %v300 = vadd.f32 %v299, %v293
        %v301 = vadd.f32 %v300, %v294
        %v302 = vadd.f32 %v301, %v295
        %v303 = vrot.slane %v302, 4
        %v304 = vadd.f32 %v302, %v303
        %v305 = vrot.slane %v304, 2
        %v306 = vadd.f32 %v304, %v305
        %v307 = vrot.slane %v306, 1
        %v308 = vadd.f32 %v306, %v307
        %vm309 = vcmask 1040384
        %v310 = vsel %vm309, %v287, %v308
        %v311 = vsel %vm206, %v310, 0.0
        %312 = vst [vmem:[%s137] sm:$0xff] %v311
        %s313 = sand.u32 %s71, 1
        %s314 = scalar_lea.sflag [#allocation3], %s313
        %s315 = sand.u32 %s71, 1
        %s316 = smul.addr %s315, 8
        %s317 = scalar_lea.vmem [#allocation2], %s316
        // Predicated region
        $region29: #{tpu_custom_call.1} parent=27 // pred_check
          %p318 = pneg %p81
        $region30: #{tpu_custom_call.1} parent=27 // pred_check_branch
          %320 = sbr.rel (%p318) target = $region32
        $region31: #{tpu_custom_call.1} parent=27 // pred_region
          %s322 = ssub.s32 128, 128
          %323 = vsyncadd %s314, %s322
          %s324 = smul.addr %s16, 128
          %s325 = scalar_lea.hbm %s2, %s324
          %s327 = sshll.u32 %s317, 4
          %s328 = int_to_ptr.vmem [resolvable:$true] %s327
          %330 = dma.vmem_to_hbm [thread:$0]  %s328, 128, %s325, %s314
        $region32: #{tpu_custom_call.1} parent=27 // pred_fallthru
          _
      $region28: #{tpu_custom_call.1} parent=5 // pred_fallthru
        _
      %p331 = scmp.le.s32.totalorder 2, %s11
      // Predicated region
      $region33: #{tpu_custom_call.1} parent=5 // pred_check
        %p332 = pneg %p331
      $region34: #{tpu_custom_call.1} parent=5 // pred_check_branch
        %334 = sbr.rel (%p332) target = $region36
      $region35: #{tpu_custom_call.1} parent=5 // pred_region
        %s335 = ssub.s32 %s11, 2
        // Predicated region
        $region37: #{tpu_custom_call.1} parent=35 // pred_check
          %p336 = pneg %p87
        $region38: #{tpu_custom_call.1} parent=35 // pred_check_branch
          %338 = sbr.rel (%p336) target = $region40
        $region39: #{tpu_custom_call.1} parent=35 // pred_region
          %s339 = sand.u32 %s72, 1
          %s340 = scalar_lea.sflag [#allocation3], %s339
          %s341 = sand.u32 %s72, 1
          %s342 = smul.addr %s341, 8
          %s343 = scalar_lea.vmem [#allocation2], %s342
          %344 = dma.done %s340, 128
        $region40: #{tpu_custom_call.1} parent=35 // pred_fallthru
          _
      $region36: #{tpu_custom_call.1} parent=5 // pred_fallthru
        _
    $region6: #{tpu_custom_call.1} parent=1 // loop_footer
      %s15 = sadd.s32 1, %s11
    $region7: #{tpu_custom_call.1} parent=1 // loop_footer_branch
      %10 = sbr.rel target = $region3
    $region8: #{tpu_custom_call.1} parent=1 // loop_exit
      _
    %345 = vsyncpa [#allocation3], 1
    %s346 = scalar_lea.sflag [#allocation3], 1
    %347 = vsyncpa %s346, 1

</llo_original>
